<compile_context>
chip_gen: v7x
topology: tpu7x:2x2x1
jax: 0.10.0
libtpu: 0.0.40
codegen_flags: <defaults>
</compile_context>

<pallas_src>
import math
import functools

import numpy as np
import jax
import jax.numpy as jnp
from jax import lax
from jax.experimental import pallas as pl
from jax.experimental.pallas import tpu as pltpu


def gqa_kernel(x_ref, wq_ref, wk_ref, wv_ref, wo_ref, b_ref, bo_ref, rope_ref,
               o_ref, acc_ref, *, repeats, head_dim, compute_dtype):
    g = pl.program_id(1)
    T = x_ref.shape[1]
    R = repeats
    D = head_dim
    Dh = D // 2

    x2 = x_ref[0]                                    # (T, C), already bf16

    # ---- projections: three single 2-D matmuls (bf16 operands, f32 acc) ----
    b = b_ref[0]                                     # (1, R*D + 2*D) f32
    q2 = jnp.dot(x2, wq_ref[0],
                 preferred_element_type=jnp.float32) + b[:, :R * D]       # (T, R*D)
    k = jnp.dot(x2, wk_ref[0],
                preferred_element_type=jnp.float32) + b[:, R * D:R * D + D]  # (T, D)
    v = jnp.dot(x2, wv_ref[0],
                preferred_element_type=jnp.float32) + b[:, R * D + D:]    # (T, D)

    # ---- fold query heads into sublanes: (T, R*D) -> (R*T, D) --------------
    # (static per-head lane slices + leading-axis concat; free for D%128==0)
    if R > 1:
        qf = jnp.concatenate([q2[:, h * D:(h + 1) * D] for h in range(R)], axis=0)
    else:
        qf = q2                                      # (R*T, D)

    # ---- RoPE: rotate-half, pure elementwise (sign folded into sin) --------
    cos_q = rope_ref[0]                              # (R*T, D) f32
    sin_q = rope_ref[1]                              # (R*T, D) f32, [-sin | sin]

    def rot_half(z):
        # swap the [re | im] halves -> [im | re]
        return jnp.concatenate([z[:, Dh:], z[:, :Dh]], axis=-1)

    qf = qf * cos_q + rot_half(qf) * sin_q           # scale already folded in wq
    k = k * cos_q[:T] + rot_half(k) * sin_q[:T]

    # ---- attention: single D-contraction matmuls, K/V stay 2-D -------------
    s = lax.dot_general(qf.astype(compute_dtype), k.astype(compute_dtype),
                        (((1,), (1,)), ((), ())),
                        preferred_element_type=jnp.float32)               # (R*T, T)

    row_t = lax.broadcasted_iota(jnp.int32, (R, T, T), 1).reshape(R * T, T)
    col = lax.broadcasted_iota(jnp.int32, (R * T, T), 1)
    s = jnp.where(row_t >= col, s, -1e30)            # scores stay f32

    m = jnp.max(s, axis=-1, keepdims=True)
    p = jnp.exp(s - m)
    denom = jnp.sum(p, axis=-1, keepdims=True)
    y = jnp.dot(p.astype(compute_dtype), v.astype(compute_dtype),
                preferred_element_type=jnp.float32)                       # (R*T, D)
    # normalize after PV: O(T*D) instead of O(T*T); EUP reciprocal
    y = y * pl.reciprocal(denom, approx=True)

    # ---- output projection: back to lane-dense (T, R*D), ONE matmul --------
    if R > 1:
        y2 = jnp.concatenate([y[h * T:(h + 1) * T, :] for h in range(R)], axis=-1)
    else:
        y2 = y                                       # (T, R*D)
    part = jnp.dot(y2.astype(compute_dtype), wo_ref[0],
                   preferred_element_type=jnp.float32)                    # (T, C)

    # ---- accumulate per-group partials in f32 VMEM; single final store -----
    @pl.when(g == 0)
    def _():
        acc_ref[...] = part

    @pl.when(g != 0)
    def _():
        acc_ref[...] = acc_ref[...] + part

    @pl.when(g == pl.num_programs(1) - 1)
    def _():
        o_ref[0] = (acc_ref[...] + bo_ref[...]).astype(o_ref.dtype)


def _rope_tables(head_dim, T, theta):
    """cos/sin tables matching precompute_freqs_cis (per re/im half)."""
    Dh = head_dim // 2
    freqs = 1.0 / (theta ** (jnp.arange(0, head_dim, 2)[:Dh].astype(jnp.float32)
                             / head_dim))
    t = jnp.arange(T, dtype=jnp.float32)
    ang = jnp.outer(t, freqs)                        # (T, Dh)
    return jnp.cos(ang), jnp.sin(ang)


def multihead_gqa(x, wq, bq, wk, bk, wv, bv, wo, bo, *, n_heads, kv_heads,
                  rope_theta=10000.0, compute_dtype=jnp.bfloat16):
    B, T, C = x.shape
    H, G = n_heads, kv_heads
    R = H // G
    D = C // H
    scale = 1.0 / math.sqrt(D)

    # ---- host-side re-layout (once, outside the kernel) --------------------
    # De-interleave the (re, im) RoPE pair columns to [re-half | im-half] for
    # q/k (so in-kernel RoPE is rotate-half) and fold 1/sqrt(D) into q.
    def deint(w):                                    # last axis of width D
        return jnp.concatenate([w[..., 0::2], w[..., 1::2]], axis=-1)

    cast = lambda a: a.astype(compute_dtype)

    wq_g = cast((deint(wq.reshape(C, H, D)) * scale)
                .reshape(C, G, R * D).transpose(1, 0, 2))        # (G, C, R*D)
    bq_g = (deint(bq.reshape(H, D)) * scale).reshape(G, 1, R * D)
    wk_g = cast(deint(wk.reshape(C, G, D)).transpose(1, 0, 2))   # (G, C, D)
    bk_g = deint(bk.reshape(G, D)).reshape(G, 1, D)
    wv_g = cast(wv.reshape(C, G, D).transpose(1, 0, 2))          # (G, C, D)
    bv_g = bv.reshape(G, 1, D)
    wo_g = cast(wo.reshape(G, R * D, C))                         # (G, R*D, C)
    b_packed = jnp.concatenate([bq_g, bk_g, bv_g], axis=-1)      # (G,1,R*D+2D) f32

    cosA, sinA = _rope_tables(D, T, rope_theta)                  # (T, Dh)
    cos_f = jnp.concatenate([cosA, cosA], axis=-1)               # (T, D)
    sin_f = jnp.concatenate([-sinA, sinA], axis=-1)              # sign folded
    rope = jnp.stack([jnp.tile(cos_f, (R, 1)),
                      jnp.tile(sin_f, (R, 1))], axis=0)          # (2, R*T, D) f32

    x_bf = x.astype(compute_dtype)                               # halve x HBM traffic

    in_specs = [
        pl.BlockSpec((1, T, C), lambda b, g: (b, 0, 0)),             # x
        pl.BlockSpec((1, C, R * D), lambda b, g: (g, 0, 0)),         # wq
        pl.BlockSpec((1, C, D), lambda b, g: (g, 0, 0)),             # wk
        pl.BlockSpec((1, C, D), lambda b, g: (g, 0, 0)),             # wv
        pl.BlockSpec((1, R * D, C), lambda b, g: (g, 0, 0)),         # wo
        pl.BlockSpec((1, 1, R * D + 2 * D), lambda b, g: (g, 0, 0)), # packed biases
        pl.BlockSpec((1, C), lambda b, g: (0, 0)),                   # bo
        pl.BlockSpec((2, R * T, D), lambda b, g: (0, 0, 0)),         # cos/sin
    ]
    out_spec = pl.BlockSpec((1, T, C), lambda b, g: (b, 0, 0))

    # VMEM budget per generation (v7x: 64 MiB physical, v5e/v6e: 128 MiB).
    try:
        vmem_cap = int(pltpu.get_tpu_info().vmem_capacity_bytes)
    except Exception:
        vmem_cap = 64 * 1024 * 1024
    vmem_limit = int(min((vmem_cap * 3) // 4, 100 * 1024 * 1024))

    flops = int(2 * B * T * C * (H * D + 2 * G * D)   # q/k/v projections
                + 4 * B * H * T * T * D               # QK^T + PV
                + 2 * B * T * H * D * C)              # output projection
    bytes_w = 2 * (wq.size + wk.size + wv.size + wo.size)
    cost = pl.CostEstimate(flops=flops,
                           transcendentals=int(B * H * T * T),
                           bytes_accessed=int(x.size * 2 + B * T * C * 4
                                              + B * bytes_w))

    kern = functools.partial(gqa_kernel, repeats=R, head_dim=D,
                             compute_dtype=compute_dtype)

    return pl.pallas_call(
        kern,
        grid_spec=pltpu.PrefetchScalarGridSpec(
            num_scalar_prefetch=0,
            grid=(B, G),
            in_specs=in_specs,
            out_specs=out_spec,
            scratch_shapes=[pltpu.VMEM((T, C), jnp.float32)]),
        out_shape=jax.ShapeDtypeStruct((B, T, C), x.dtype),
        compiler_params=pltpu.CompilerParams(
            dimension_semantics=("parallel", "arbitrary"),
            vmem_limit_bytes=vmem_limit),
        cost_estimate=cost,
    )(x_bf, wq_g, wk_g, wv_g, wo_g, b_packed, bo, rope)


def ref_forward(x, wq, bq, wk, bk, wv, bv, wo, bo, *, n_heads, kv_heads,
                rope_theta=10000.0):
    """Pure-JAX f32 reference reproducing the PyTorch forward."""
    B, T, C = x.shape
    D = C // n_heads
    rep = n_heads // kv_heads
    cosA, sinA = _rope_tables(D, T, rope_theta)
    q = (x @ wq + bq).reshape(B, T, n_heads, D).transpose(0, 2, 1, 3)
    k = (x @ wk + bk).reshape(B, T, kv_heads, D).transpose(0, 2, 1, 3)
    v = (x @ wv + bv).reshape(B, T, kv_heads, D).transpose(0, 2, 1, 3)

    def rope(z):
        zr, zi = z[..., 0::2], z[..., 1::2]
        out = jnp.stack([zr * cosA - zi * sinA, zr * sinA + zi * cosA], axis=-1)
        return out.reshape(z.shape)

    q, k = rope(q), rope(k)
    k = jnp.repeat(k, rep, axis=1)
    v = jnp.repeat(v, rep, axis=1)
    s = jnp.einsum('bhqd,bhkd->bhqk', q, k) / math.sqrt(D)
    mask = jnp.tril(jnp.ones((T, T), bool))
    s = jnp.where(mask, s, -jnp.inf)
    p = jax.nn.softmax(s, axis=-1)
    y = jnp.einsum('bhqk,bhkd->bhqd', p, v)
    y = y.transpose(0, 2, 1, 3).reshape(B, T, n_heads * D)
    return y @ wo + bo


if __name__ == "__main__":
    # module config
    n_embd, n_heads, kv_heads = 32, 4, 2
    rope_theta = 10000.0
    block_size = 16
    head_dim = n_embd // n_heads

    # small input
    B, T, C = 2, 8, n_embd
    assert T <= block_size

    key = jax.random.PRNGKey(0)
    ks = jax.random.split(key, 10)
    x = jax.random.normal(ks[0], (B, T, C), jnp.float32)

    HD, KD = n_heads * head_dim, kv_heads * head_dim
    init = lambda k, shp: 0.02 * jax.random.normal(k, shp, jnp.float32)
    wq, bq = init(ks[1], (C, HD)), init(ks[2], (1, HD))
    wk, bk = init(ks[3], (C, KD)), init(ks[4], (1, KD))
    wv, bv = init(ks[5], (C, KD)), init(ks[6], (1, KD))
    wo, bo = init(ks[7], (HD, C)), init(ks[8], (1, C))

    out = multihead_gqa(x, wq, bq, wk, bk, wv, bv, wo, bo,
                        n_heads=n_heads, kv_heads=kv_heads,
                        rope_theta=rope_theta)
    out = jax.block_until_ready(out)

    ref = ref_forward(x, wq, bq, wk, bk, wv, bv, wo, bo,
                      n_heads=n_heads, kv_heads=kv_heads,
                      rope_theta=rope_theta)
    assert out.shape == (B, T, C)
    # bf16 MXU operands (f32 accumulation) + approx reciprocal -> slightly
    # looser tolerance than a pure-f32 pipeline.
    np.testing.assert_allclose(np.asarray(out), np.asarray(ref),
                               rtol=1e-2, atol=3e-3)
    print("KERNEL_OK")
</pallas_src>

<mosaic_0001>
module attributes {stable_mosaic.version = 11 : i64} {
  func.func @gqa_kernel(%arg0: i32, %arg1: i32, %arg2: memref<1x8x32xbf16, #tpu.memory_space<vmem>>, %arg3: memref<1x32x16xbf16, #tpu.memory_space<vmem>>, %arg4: memref<1x32x8xbf16, #tpu.memory_space<vmem>>, %arg5: memref<1x32x8xbf16, #tpu.memory_space<vmem>>, %arg6: memref<1x16x32xbf16, #tpu.memory_space<vmem>>, %arg7: memref<1x1x32xf32, #tpu.memory_space<vmem>>, %arg8: memref<1x32xf32, #tpu.memory_space<vmem>>, %arg9: memref<2x16x8xf32, #tpu.memory_space<vmem>>, %arg10: memref<1x8x32xf32, #tpu.memory_space<vmem>>, %arg11: memref<8x32xf32, #tpu.memory_space<vmem>>) attributes {dimension_semantics = [#tpu.dimension_semantics<parallel>, #tpu.dimension_semantics<arbitrary>], iteration_bounds = array<i64: 2, 2>, scalar_prefetch = 0 : i64, scratch_operands = 1 : i64, tpu.core_type = #tpu.core_type<tc>, window_params = [{transform_indices = @transform_0, window_bounds = array<i64: 1, 8, 32>}, {transform_indices = @transform_1, window_bounds = array<i64: 1, 32, 16>}, {transform_indices = @transform_2, window_bounds = array<i64: 1, 32, 8>}, {transform_indices = @transform_3, window_bounds = array<i64: 1, 32, 8>}, {transform_indices = @transform_4, window_bounds = array<i64: 1, 16, 32>}, {transform_indices = @transform_5, window_bounds = array<i64: 1, 1, 32>}, {pipeline_mode = #tpu.pipeline_mode<synchronous>, transform_indices = @transform_6, window_bounds = array<i64: 1, 32>}, {pipeline_mode = #tpu.pipeline_mode<synchronous>, transform_indices = @transform_7, window_bounds = array<i64: 2, 16, 8>}, {transform_indices = @transform_8, window_bounds = array<i64: 1, 8, 32>}]} {
    %c0 = arith.constant 0 : index
    %c0_0 = arith.constant 0 : index
    %c0_1 = arith.constant 0 : index
    %0 = vector.load %arg2[%c0, %c0_0, %c0_1] : memref<1x8x32xbf16, #tpu.memory_space<vmem>>, vector<1x8x32xbf16>
    %1 = vector.shape_cast %0 : vector<1x8x32xbf16> to vector<8x32xbf16>
    %c0_2 = arith.constant 0 : index
    %c0_3 = arith.constant 0 : index
    %c0_4 = arith.constant 0 : index
    %2 = vector.load %arg7[%c0_2, %c0_3, %c0_4] : memref<1x1x32xf32, #tpu.memory_space<vmem>>, vector<1x1x32xf32>
    %3 = vector.shape_cast %2 : vector<1x1x32xf32> to vector<1x32xf32>
    %c0_5 = arith.constant 0 : index
    %c0_6 = arith.constant 0 : index
    %c0_7 = arith.constant 0 : index
    %4 = vector.load %arg3[%c0_5, %c0_6, %c0_7] : memref<1x32x16xbf16, #tpu.memory_space<vmem>>, vector<1x32x16xbf16>
    %5 = vector.shape_cast %4 : vector<1x32x16xbf16> to vector<32x16xbf16>
    %cst = arith.constant dense<0.000000e+00> : vector<8x16xf32>
    %6 = tpu.matmul %1, %5, %cst {dimension_numbers = #tpu.dot_dimension_numbers<[1], [0], [0], [1], [0, 0, 1, 1], [], []>} : vector<8x32xbf16>, vector<32x16xbf16>, vector<8x16xf32> -> vector<8x16xf32>
    %7 = vector.extract_strided_slice %3 {offsets = [0, 0], sizes = [1, 16], strides = [1, 1]} : vector<1x32xf32> to vector<1x16xf32>
    %8 = vector.broadcast %7 : vector<1x16xf32> to vector<8x16xf32>
    %9 = arith.addf %6, %8 : vector<8x16xf32>
    %c0_8 = arith.constant 0 : index
    %c0_9 = arith.constant 0 : index
    %c0_10 = arith.constant 0 : index
    %10 = vector.load %arg4[%c0_8, %c0_9, %c0_10] : memref<1x32x8xbf16, #tpu.memory_space<vmem>>, vector<1x32x8xbf16>
    %11 = vector.shape_cast %10 : vector<1x32x8xbf16> to vector<32x8xbf16>
    %cst_11 = arith.constant dense<0.000000e+00> : vector<8x8xf32>
    %12 = tpu.matmul %1, %11, %cst_11 {dimension_numbers = #tpu.dot_dimension_numbers<[1], [0], [0], [1], [0, 0, 1, 1], [], []>} : vector<8x32xbf16>, vector<32x8xbf16>, vector<8x8xf32> -> vector<8x8xf32>
    %13 = vector.extract_strided_slice %3 {offsets = [0, 16], sizes = [1, 8], strides = [1, 1]} : vector<1x32xf32> to vector<1x8xf32>
    %14 = vector.broadcast %13 : vector<1x8xf32> to vector<8x8xf32>
    %15 = arith.addf %12, %14 : vector<8x8xf32>
    %c0_12 = arith.constant 0 : index
    %c0_13 = arith.constant 0 : index
    %c0_14 = arith.constant 0 : index
    %16 = vector.load %arg5[%c0_12, %c0_13, %c0_14] : memref<1x32x8xbf16, #tpu.memory_space<vmem>>, vector<1x32x8xbf16>
    %17 = vector.shape_cast %16 : vector<1x32x8xbf16> to vector<32x8xbf16>
    %cst_15 = arith.constant dense<0.000000e+00> : vector<8x8xf32>
    %18 = tpu.matmul %1, %17, %cst_15 {dimension_numbers = #tpu.dot_dimension_numbers<[1], [0], [0], [1], [0, 0, 1, 1], [], []>} : vector<8x32xbf16>, vector<32x8xbf16>, vector<8x8xf32> -> vector<8x8xf32>
    %19 = vector.extract_strided_slice %3 {offsets = [0, 24], sizes = [1, 8], strides = [1, 1]} : vector<1x32xf32> to vector<1x8xf32>
    %20 = vector.broadcast %19 : vector<1x8xf32> to vector<8x8xf32>
    %21 = arith.addf %18, %20 : vector<8x8xf32>
    %22 = vector.extract_strided_slice %9 {offsets = [0, 0], sizes = [8, 8], strides = [1, 1]} : vector<8x16xf32> to vector<8x8xf32>
    %23 = vector.extract_strided_slice %9 {offsets = [0, 8], sizes = [8, 8], strides = [1, 1]} : vector<8x16xf32> to vector<8x8xf32>
    %24 = tpu.concatenate %22, %23 in 0 : vector<8x8xf32>, vector<8x8xf32> -> vector<16x8xf32>
    %c0_16 = arith.constant 0 : index
    %c0_17 = arith.constant 0 : index
    %c0_18 = arith.constant 0 : index
    %25 = vector.load %arg9[%c0_16, %c0_17, %c0_18] : memref<2x16x8xf32, #tpu.memory_space<vmem>>, vector<1x16x8xf32>
    %26 = vector.shape_cast %25 : vector<1x16x8xf32> to vector<16x8xf32>
    %c1 = arith.constant 1 : index
    %c0_19 = arith.constant 0 : index
    %c0_20 = arith.constant 0 : index
    %27 = vector.load %arg9[%c1, %c0_19, %c0_20] : memref<2x16x8xf32, #tpu.memory_space<vmem>>, vector<1x16x8xf32>
    %28 = vector.shape_cast %27 : vector<1x16x8xf32> to vector<16x8xf32>
    %29 = arith.mulf %24, %26 : vector<16x8xf32>
    %30 = vector.extract_strided_slice %24 {offsets = [0, 4], sizes = [16, 4], strides = [1, 1]} : vector<16x8xf32> to vector<16x4xf32>
    %31 = vector.extract_strided_slice %24 {offsets = [0, 0], sizes = [16, 4], strides = [1, 1]} : vector<16x8xf32> to vector<16x4xf32>
    %32 = tpu.concatenate %30, %31 in 1 : vector<16x4xf32>, vector<16x4xf32> -> vector<16x8xf32>
    %33 = arith.mulf %32, %28 : vector<16x8xf32>
    %34 = arith.addf %29, %33 : vector<16x8xf32>
    %35 = vector.extract_strided_slice %26 {offsets = [0, 0], sizes = [8, 8], strides = [1, 1]} : vector<16x8xf32> to vector<8x8xf32>
    %36 = arith.mulf %15, %35 : vector<8x8xf32>
    %37 = vector.extract_strided_slice %15 {offsets = [0, 4], sizes = [8, 4], strides = [1, 1]} : vector<8x8xf32> to vector<8x4xf32>
    %38 = vector.extract_strided_slice %15 {offsets = [0, 0], sizes = [8, 4], strides = [1, 1]} : vector<8x8xf32> to vector<8x4xf32>
    %39 = tpu.concatenate %37, %38 in 1 : vector<8x4xf32>, vector<8x4xf32> -> vector<8x8xf32>
    %40 = vector.extract_strided_slice %28 {offsets = [0, 0], sizes = [8, 8], strides = [1, 1]} : vector<16x8xf32> to vector<8x8xf32>
    %41 = arith.mulf %39, %40 : vector<8x8xf32>
    %42 = arith.addf %36, %41 : vector<8x8xf32>
    %43 = arith.truncf %34 : vector<16x8xf32> to vector<16x8xbf16>
    %44 = arith.truncf %42 : vector<8x8xf32> to vector<8x8xbf16>
    %cst_21 = arith.constant dense<0.000000e+00> : vector<16x8xf32>
    %45 = tpu.matmul %43, %44, %cst_21 {dimension_numbers = #tpu.dot_dimension_numbers<[1], [1], [0], [0], [0, 0, 1, 0], [], []>} : vector<16x8xbf16>, vector<8x8xbf16>, vector<16x8xf32> -> vector<16x8xf32>
    %46 = tpu.iota {dimensions = array<i32: 1>} : vector<2x8x8xi32>
    %47 = vector.shape_cast %46 : vector<2x8x8xi32> to vector<16x8xi32>
    %48 = tpu.iota {dimensions = array<i32: 1>} : vector<16x8xi32>
    %49 = arith.cmpi sge, %47, %48 : vector<16x8xi32>
    %cst_22 = arith.constant -1.000000e+30 : f32
    %50 = vector.broadcast %cst_22 : f32 to vector<16x8xf32>
    %51 = arith.select %49, %45, %50 : vector<16x8xi1>, vector<16x8xf32>
    %cst_23 = arith.constant dense<0xFF800000> : vector<16xf32>
    %52 = vector.multi_reduction <maximumf>, %51, %cst_23 [1] : vector<16x8xf32> to vector<16xf32>
    %53 = vector.shape_cast %52 : vector<16xf32> to vector<16x1xf32>
    %54 = vector.broadcast %53 : vector<16x1xf32> to vector<16x8xf32>
    %55 = arith.subf %51, %54 : vector<16x8xf32>
    %56 = math.exp %55 : vector<16x8xf32>
    %cst_24 = arith.constant dense<0.000000e+00> : vector<16xf32>
    %57 = vector.multi_reduction <add>, %56, %cst_24 [1] : vector<16x8xf32> to vector<16xf32>
    %58 = vector.shape_cast %57 : vector<16xf32> to vector<16x1xf32>
    %59 = arith.truncf %56 : vector<16x8xf32> to vector<16x8xbf16>
    %60 = arith.truncf %21 : vector<8x8xf32> to vector<8x8xbf16>
    %cst_25 = arith.constant dense<0.000000e+00> : vector<16x8xf32>
    %61 = tpu.matmul %59, %60, %cst_25 {dimension_numbers = #tpu.dot_dimension_numbers<[1], [0], [0], [1], [0, 0, 1, 1], [], []>} : vector<16x8xbf16>, vector<8x8xbf16>, vector<16x8xf32> -> vector<16x8xf32>
    %62 = tpu.reciprocal %58 {approx = true} : vector<16x1xf32> -> vector<16x1xf32>
    %63 = vector.broadcast %62 : vector<16x1xf32> to vector<16x8xf32>
    %64 = arith.mulf %61, %63 : vector<16x8xf32>
    %65 = vector.extract_strided_slice %64 {offsets = [0, 0], sizes = [8, 8], strides = [1, 1]} : vector<16x8xf32> to vector<8x8xf32>
    %66 = vector.extract_strided_slice %64 {offsets = [8, 0], sizes = [8, 8], strides = [1, 1]} : vector<16x8xf32> to vector<8x8xf32>
    %67 = tpu.concatenate %65, %66 in 1 : vector<8x8xf32>, vector<8x8xf32> -> vector<8x16xf32>
    %68 = arith.truncf %67 : vector<8x16xf32> to vector<8x16xbf16>
    %c0_26 = arith.constant 0 : index
    %c0_27 = arith.constant 0 : index
    %c0_28 = arith.constant 0 : index
    %69 = vector.load %arg6[%c0_26, %c0_27, %c0_28] : memref<1x16x32xbf16, #tpu.memory_space<vmem>>, vector<1x16x32xbf16>
    %70 = vector.shape_cast %69 : vector<1x16x32xbf16> to vector<16x32xbf16>
    %cst_29 = arith.constant dense<0.000000e+00> : vector<8x32xf32>
    %71 = tpu.matmul %68, %70, %cst_29 {dimension_numbers = #tpu.dot_dimension_numbers<[1], [0], [0], [1], [0, 0, 1, 1], [], []>} : vector<8x16xbf16>, vector<16x32xbf16>, vector<8x32xf32> -> vector<8x32xf32>
    %c0_i32 = arith.constant 0 : i32
    %72 = arith.cmpi eq, %arg1, %c0_i32 : i32
    %73 = arith.extui %72 : i1 to i32
    %c0_i32_30 = arith.constant 0 : i32
    %74 = arith.cmpi ne, %73, %c0_i32_30 : i32
    scf.if %74 {
      %c0_34 = arith.constant 0 : index
      %c0_35 = arith.constant 0 : index
      %81 = vector.load %arg11[%c0_34, %c0_35] : memref<8x32xf32, #tpu.memory_space<vmem>>, vector<8x32xf32>
      tpu.vector_store %arg11[%c0_34, %c0_35], %71 {strides = array<i32>} : memref<8x32xf32, #tpu.memory_space<vmem>>, vector<8x32xf32>,
    } else {
    }
    %c0_i32_31 = arith.constant 0 : i32
    %75 = arith.cmpi ne, %arg1, %c0_i32_31 : i32
    %76 = arith.extui %75 : i1 to i32
    %c0_i32_32 = arith.constant 0 : i32
    %77 = arith.cmpi ne, %76, %c0_i32_32 : i32
    scf.if %77 {
      %c0_34 = arith.constant 0 : index
      %c0_35 = arith.constant 0 : index
      %81 = vector.load %arg11[%c0_34, %c0_35] : memref<8x32xf32, #tpu.memory_space<vmem>>, vector<8x32xf32>
      %82 = arith.addf %81, %71 : vector<8x32xf32>
      %c0_36 = arith.constant 0 : index
      %c0_37 = arith.constant 0 : index
      %83 = vector.load %arg11[%c0_36, %c0_37] : memref<8x32xf32, #tpu.memory_space<vmem>>, vector<8x32xf32>
      tpu.vector_store %arg11[%c0_36, %c0_37], %82 {strides = array<i32>} : memref<8x32xf32, #tpu.memory_space<vmem>>, vector<8x32xf32>,
    } else {
    }
    %c1_i32 = arith.constant 1 : i32
    %78 = arith.cmpi eq, %arg1, %c1_i32 : i32
    %79 = arith.extui %78 : i1 to i32
    %c0_i32_33 = arith.constant 0 : i32
    %80 = arith.cmpi ne, %79, %c0_i32_33 : i32
    scf.if %80 {
      %c0_34 = arith.constant 0 : index
      %c0_35 = arith.constant 0 : index
      %81 = vector.load %arg11[%c0_34, %c0_35] : memref<8x32xf32, #tpu.memory_space<vmem>>, vector<8x32xf32>
      %c0_36 = arith.constant 0 : index
      %c0_37 = arith.constant 0 : index
      %82 = vector.load %arg8[%c0_36, %c0_37] : memref<1x32xf32, #tpu.memory_space<vmem>>, vector<1x32xf32>
      %83 = vector.broadcast %82 : vector<1x32xf32> to vector<8x32xf32>
      %84 = arith.addf %81, %83 : vector<8x32xf32>
      %c0_38 = arith.constant 0 : index
      %c0_39 = arith.constant 0 : index
      %c0_40 = arith.constant 0 : index
      %85 = vector.load %arg10[%c0_38, %c0_39, %c0_40] : memref<1x8x32xf32, #tpu.memory_space<vmem>>, vector<1x8x32xf32>
      %86 = vector.shape_cast %85 : vector<1x8x32xf32> to vector<8x32xf32>
      %87 = vector.shape_cast %84 : vector<8x32xf32> to vector<1x8x32xf32>
      tpu.vector_store %arg10[%c0_38, %c0_39, %c0_40], %87 {strides = array<i32>} : memref<1x8x32xf32, #tpu.memory_space<vmem>>, vector<1x8x32xf32>,
    } else {
    }
    return
  }
  func.func @transform_0(%arg0: i32, %arg1: i32) -> (i32, i32, i32) {
    %c0_i32 = arith.constant 0 : i32
    %c0_i32_0 = arith.constant 0 : i32
    %c0_i32_1 = arith.constant 0 : i32
    return %arg0, %c0_i32, %c0_i32_0 : i32, i32, i32
  }
  func.func @transform_1(%arg0: i32, %arg1: i32) -> (i32, i32, i32) {
    %c0_i32 = arith.constant 0 : i32
    %c0_i32_0 = arith.constant 0 : i32
    %c0_i32_1 = arith.constant 0 : i32
    return %arg1, %c0_i32, %c0_i32_0 : i32, i32, i32
  }
  func.func @transform_2(%arg0: i32, %arg1: i32) -> (i32, i32, i32) {
    %c0_i32 = arith.constant 0 : i32
    %c0_i32_0 = arith.constant 0 : i32
    %c0_i32_1 = arith.constant 0 : i32
    return %arg1, %c0_i32, %c0_i32_0 : i32, i32, i32
  }
  func.func @transform_3(%arg0: i32, %arg1: i32) -> (i32, i32, i32) {
    %c0_i32 = arith.constant 0 : i32
    %c0_i32_0 = arith.constant 0 : i32
    %c0_i32_1 = arith.constant 0 : i32
    return %arg1, %c0_i32, %c0_i32_0 : i32, i32, i32
  }
  func.func @transform_4(%arg0: i32, %arg1: i32) -> (i32, i32, i32) {
    %c0_i32 = arith.constant 0 : i32
    %c0_i32_0 = arith.constant 0 : i32
    %c0_i32_1 = arith.constant 0 : i32
    return %arg1, %c0_i32, %c0_i32_0 : i32, i32, i32
  }
  func.func @transform_5(%arg0: i32, %arg1: i32) -> (i32, i32, i32) {
    %c0_i32 = arith.constant 0 : i32
    %c0_i32_0 = arith.constant 0 : i32
    %c0_i32_1 = arith.constant 0 : i32
    return %arg1, %c0_i32, %c0_i32_0 : i32, i32, i32
  }
  func.func @transform_6(%arg0: i32, %arg1: i32) -> (i32, i32) {
    %c0_i32 = arith.constant 0 : i32
    %c0_i32_0 = arith.constant 0 : i32
    %c0_i32_1 = arith.constant 0 : i32
    return %c0_i32, %c0_i32_0 : i32, i32
  }
  func.func @transform_7(%arg0: i32, %arg1: i32) -> (i32, i32, i32) {
    %c0_i32 = arith.constant 0 : i32
    %c0_i32_0 = arith.constant 0 : i32
    %c0_i32_1 = arith.constant 0 : i32
    %c0_i32_2 = arith.constant 0 : i32
    return %c0_i32, %c0_i32_0, %c0_i32_1 : i32, i32, i32
  }
  func.func @transform_8(%arg0: i32, %arg1: i32) -> (i32, i32, i32) {
    %c0_i32 = arith.constant 0 : i32
    %c0_i32_0 = arith.constant 0 : i32
    %c0_i32_1 = arith.constant 0 : i32
    return %arg0, %c0_i32, %c0_i32_0 : i32, i32, i32
  }
}

</mosaic_0001>

<llo_original>
// kernel: tpu_custom_call.1
$region0: #{tpu_custom_call.1}
  #allocation0 [shape = 'u32[]', space=smem, size = 0x4, offset = 0x4, fixed_abs, tag = 'smem constant byte address 0x4 - core index']
  #allocation1 [shape = 'u32[144,128]{1,0:T(1,128)}', space=vmem, size = 0x12000, scoped, tag = 'internal scratch']
  #allocation2 [shape = 'f32[8,32]{1,0:T(8,128)}', space=vmem, size = 0x1000, scoped, tag = 'scratch operand']
  %s0 = inlined_call_operand.vmem [shape: bf16[2,8,32], index: 0, kind: input, shape index: {}]
  %s1 = inlined_call_operand.vmem [shape: bf16[2,32,16], index: 1, kind: input, shape index: {}]
  %s2 = inlined_call_operand.vmem [shape: bf16[2,32,8], index: 2, kind: input, shape index: {}]
  %s3 = inlined_call_operand.vmem [shape: bf16[2,32,8], index: 3, kind: input, shape index: {}]
  %s4 = inlined_call_operand.vmem [shape: bf16[2,16,32], index: 4, kind: input, shape index: {}]
  %s5 = inlined_call_operand.vmem [shape: f32[2,1,32], index: 5, kind: input, shape index: {}]
  %s6 = inlined_call_operand.vmem [shape: f32[1,32], index: 6, kind: input, shape index: {}]
  %s7 = inlined_call_operand.vmem [shape: f32[2,16,8], index: 7, kind: input, shape index: {}]
  %s8 = inlined_call_operand.hbm [shape: f32[2,8,32], index: 8, kind: output, shape index: {}]
  %s9 = sld [smem:[#allocation0]]
  $region77: #{tpu_custom_call.1} parent=0
    _
  %s11 = ssub.s32 1, %s9
  %s12 = scalar_select 0, %s11, %s9
  $region1: #{tpu_custom_call.1} parent=0
    #allocation3 [shape = 'u8[8192]{0}', space=vmem, size = 0x2000, scoped, tag = 'output window, operand 0']
    #allocation4 [shape = 's32[2]{0}', space=sflag, size = 0x8, scoped, tag = 'scoped memory for tpu_custom_call.1']
    %13 = vsyncpa [#allocation4], 0
    %s14 = scalar_lea.sflag [#allocation4], 1
    %15 = vsyncpa %s14, 0
    loop: start=0, step=1, limit=6
    $region2: #{tpu_custom_call.1} parent=1 // loop_pre_header
      _
    $region3: #{tpu_custom_call.1} parent=1 // loop_header
      %s17 = sphi 0, %s21
      %p18 = scmp.ge.s32.totalorder %s17, 6
      %s24 = sphi 0, %s36
      %s25 = sphi 0, %s32
      %s26 = sphi 0, %s24
      %s27 = sphi 0, %s25
      %s28 = sphi 0, %s26
      %s29 = sphi 0, %s27
      %s39 = sphi 0, %s41
      %s42 = sphi 0, %s39
      %s43 = sphi 0, %s42
      %s59 = sphi 0, %s43
      %s65 = sphi 0, %s67
      %s68 = sphi 0, %s65
      %s69 = sphi 0, %s68
      %s85 = sphi 0, %s69
      %s91 = sphi 0, %s93
      %s94 = sphi 0, %s91
      %s95 = sphi 0, %s94
      %s111 = sphi 0, %s95
      %s117 = sphi 0, %s119
      %s120 = sphi 0, %s117
      %s121 = sphi 0, %s120
      %s137 = sphi 0, %s121
      %s143 = sphi 0, %s145
      %s146 = sphi 0, %s143
      %s147 = sphi 0, %s146
      %s163 = sphi 0, %s147
      %s169 = sphi 0, %s171
      %s172 = sphi 0, %s169
      %s173 = sphi 0, %s172
      %s189 = sphi 0, %s173
      %s193 = sphi 0, %s193
      %s195 = sphi 0, %s193
      %s196 = sphi 0, %s195
      %s210 = sphi 0, %s196
      %s214 = sphi 0, %s214
      %s216 = sphi 0, %s214
      %s217 = sphi 0, %s216
      %s231 = sphi 0, %s217
      %s237 = sphi 0, %s239
      %s240 = sphi 0, %s237
      %s241 = sphi 0, %s240
      %s257 = sphi 0, %s241
    $region4: #{tpu_custom_call.1} parent=1 // loop_header_branch
      %20 = sbr.rel (%p18) target = $region8
    $region5: #{tpu_custom_call.1} parent=1 // loop_body
      %s22 = ssub.s32 %s17, 1
      %s23 = ssub.s32 %s17, 2
      %s30 = sadd.s32 1, %s25
      %p31 = scmp.ge.s32.totalorder %s30, 2
      %s32 = scalar_select %p31, 0, %s30
      %s33 = sadd.s32 1, %s24
      %s34 = scalar_select %p31, %s33, %s24
      %p35 = scmp.ge.s32.totalorder %s34, 2
      %s36 = scalar_select %p35, 0, %s34
      %s37 = ssub.s32 %s24, %s36
      %p38 = scmp.eq.s32.totalorder %s37, 0
      %s40 = sadd.s32 %s39, 1
      %s41 = scalar_select %p38, %s39, %s40
      %p44 = pneg %p38
      %p45 = scmp.eq.s32.totalorder %s17, 3
      %p46 = por %p44, %p45
      %p47 = scmp.ne.s32.totalorder %s39, %s42
      %p48 = scmp.eq.s32.totalorder %s17, 0
      %p49 = por %p47, %p48
      %p50 = scmp.ne.s32.totalorder %s39, %s42
      %p51 = scmp.eq.s32.totalorder %s22, 3
      %p52 = por %p50, %p51
      %p53 = scmp.ne.s32.totalorder %s42, %s43
      %p54 = scmp.eq.s32.totalorder %s22, 0
      %p55 = por %p53, %p54
      %p56 = scmp.ne.s32.totalorder %s42, %s43
      %p57 = scmp.eq.s32.totalorder %s23, 3
      %p58 = por %p56, %p57
      %p60 = scmp.ne.s32.totalorder %s43, %s59
      %p61 = scmp.eq.s32.totalorder %s23, 0
      %p62 = por %p60, %p61
      %s63 = ssub.s32 %s25, %s32
      %p64 = scmp.eq.s32.totalorder %s63, 0
      %s66 = sadd.s32 %s65, 1
      %s67 = scalar_select %p64, %s65, %s66
      %p70 = pneg %p64
      %p71 = scmp.eq.s32.totalorder %s17, 3
      %p72 = por %p70, %p71
      %p73 = scmp.ne.s32.totalorder %s65, %s68
      %p74 = scmp.eq.s32.totalorder %s17, 0
      %p75 = por %p73, %p74
      %p76 = scmp.ne.s32.totalorder %s65, %s68
      %p77 = scmp.eq.s32.totalorder %s22, 3
      %p78 = por %p76, %p77
      %p79 = scmp.ne.s32.totalorder %s68, %s69
      %p80 = scmp.eq.s32.totalorder %s22, 0
      %p81 = por %p79, %p80
      %p82 = scmp.ne.s32.totalorder %s68, %s69
      %p83 = scmp.eq.s32.totalorder %s23, 3
      %p84 = por %p82, %p83
      %p86 = scmp.ne.s32.totalorder %s69, %s85
      %p87 = scmp.eq.s32.totalorder %s23, 0
      %p88 = por %p86, %p87
      %s89 = ssub.s32 %s25, %s32
      %p90 = scmp.eq.s32.totalorder %s89, 0
      %s92 = sadd.s32 %s91, 1
      %s93 = scalar_select %p90, %s91, %s92
      %p96 = pneg %p90
      %p97 = scmp.eq.s32.totalorder %s17, 3
      %p98 = por %p96, %p97
      %p99 = scmp.ne.s32.totalorder %s91, %s94
      %p100 = scmp.eq.s32.totalorder %s17, 0
      %p101 = por %p99, %p100
      %p102 = scmp.ne.s32.totalorder %s91, %s94
      %p103 = scmp.eq.s32.totalorder %s22, 3
      %p104 = por %p102, %p103
      %p105 = scmp.ne.s32.totalorder %s94, %s95
      %p106 = scmp.eq.s32.totalorder %s22, 0
      %p107 = por %p105, %p106
      %p108 = scmp.ne.s32.totalorder %s94, %s95
      %p109 = scmp.eq.s32.totalorder %s23, 3
      %p110 = por %p108, %p109
      %p112 = scmp.ne.s32.totalorder %s95, %s111
      %p113 = scmp.eq.s32.totalorder %s23, 0
      %p114 = por %p112, %p113
      %s115 = ssub.s32 %s25, %s32
      %p116 = scmp.eq.s32.totalorder %s115, 0
      %s118 = sadd.s32 %s117, 1
      %s119 = scalar_select %p116, %s117, %s118
      %p122 = pneg %p116
      %p123 = scmp.eq.s32.totalorder %s17, 3
      %p124 = por %p122, %p123
      %p125 = scmp.ne.s32.totalorder %s117, %s120
      %p126 = scmp.eq.s32.totalorder %s17, 0
      %p127 = por %p125, %p126
      %p128 = scmp.ne.s32.totalorder %s117, %s120
      %p129 = scmp.eq.s32.totalorder %s22, 3
      %p130 = por %p128, %p129
      %p131 = scmp.ne.s32.totalorder %s120, %s121
      %p132 = scmp.eq.s32.totalorder %s22, 0
      %p133 = por %p131, %p132
      %p134 = scmp.ne.s32.totalorder %s120, %s121
      %p135 = scmp.eq.s32.totalorder %s23, 3
      %p136 = por %p134, %p135
      %p138 = scmp.ne.s32.totalorder %s121, %s137
      %p139 = scmp.eq.s32.totalorder %s23, 0
      %p140 = por %p138, %p139
      %s141 = ssub.s32 %s25, %s32
      %p142 = scmp.eq.s32.totalorder %s141, 0
      %s144 = sadd.s32 %s143, 1
      %s145 = scalar_select %p142, %s143, %s144
      %p148 = pneg %p142
      %p149 = scmp.eq.s32.totalorder %s17, 3
      %p150 = por %p148, %p149
      %p151 = scmp.ne.s32.totalorder %s143, %s146
      %p152 = scmp.eq.s32.totalorder %s17, 0
      %p153 = por %p151, %p152
      %p154 = scmp.ne.s32.totalorder %s143, %s146
      %p155 = scmp.eq.s32.totalorder %s22, 3
      %p156 = por %p154, %p155
      %p157 = scmp.ne.s32.totalorder %s146, %s147
      %p158 = scmp.eq.s32.totalorder %s22, 0
      %p159 = por %p157, %p158
      %p160 = scmp.ne.s32.totalorder %s146, %s147
      %p161 = scmp.eq.s32.totalorder %s23, 3
      %p162 = por %p160, %p161
      %p164 = scmp.ne.s32.totalorder %s147, %s163
      %p165 = scmp.eq.s32.totalorder %s23, 0
      %p166 = por %p164, %p165
      %s167 = ssub.s32 %s25, %s32
      %p168 = scmp.eq.s32.totalorder %s167, 0
      %s170 = sadd.s32 %s169, 1
      %s171 = scalar_select %p168, %s169, %s170
      %p174 = pneg %p168
      %p175 = scmp.eq.s32.totalorder %s17, 3
      %p176 = por %p174, %p175
      %p177 = scmp.ne.s32.totalorder %s169, %s172
      %p178 = scmp.eq.s32.totalorder %s17, 0
      %p179 = por %p177, %p178
      %p180 = scmp.ne.s32.totalorder %s169, %s172
      %p181 = scmp.eq.s32.totalorder %s22, 3
      %p182 = por %p180, %p181
      %p183 = scmp.ne.s32.totalorder %s172, %s173
      %p184 = scmp.eq.s32.totalorder %s22, 0
      %p185 = por %p183, %p184
      %p186 = scmp.ne.s32.totalorder %s172, %s173
      %p187 = scmp.eq.s32.totalorder %s23, 3
      %p188 = por %p186, %p187
      %p190 = scmp.ne.s32.totalorder %s173, %s189
      %p191 = scmp.eq.s32.totalorder %s23, 0
      %p192 = por %p190, %p191
      %s194 = sadd.s32 %s193, 1
      %p197 = scmp.eq.s32.totalorder %s17, 3
      %p198 = scmp.ne.s32.totalorder %s193, %s195
      %p199 = scmp.eq.s32.totalorder %s17, 0
      %p200 = por %p198, %p199
      %p201 = scmp.ne.s32.totalorder %s193, %s195
      %p202 = scmp.eq.s32.totalorder %s22, 3
      %p203 = por %p201, %p202
      %p204 = scmp.ne.s32.totalorder %s195, %s196
      %p205 = scmp.eq.s32.totalorder %s22, 0
      %p206 = por %p204, %p205
      %p207 = scmp.ne.s32.totalorder %s195, %s196
      %p208 = scmp.eq.s32.totalorder %s23, 3
      %p209 = por %p207, %p208
      %p211 = scmp.ne.s32.totalorder %s196, %s210
      %p212 = scmp.eq.s32.totalorder %s23, 0
      %p213 = por %p211, %p212
      %s215 = sadd.s32 %s214, 1
      %p218 = scmp.eq.s32.totalorder %s17, 3
      %p219 = scmp.ne.s32.totalorder %s214, %s216
      %p220 = scmp.eq.s32.totalorder %s17, 0
      %p221 = por %p219, %p220
      %p222 = scmp.ne.s32.totalorder %s214, %s216
      %p223 = scmp.eq.s32.totalorder %s22, 3
      %p224 = por %p222, %p223
      %p225 = scmp.ne.s32.totalorder %s216, %s217
      %p226 = scmp.eq.s32.totalorder %s22, 0
      %p227 = por %p225, %p226
      %p228 = scmp.ne.s32.totalorder %s216, %s217
      %p229 = scmp.eq.s32.totalorder %s23, 3
      %p230 = por %p228, %p229
      %p232 = scmp.ne.s32.totalorder %s217, %s231
      %p233 = scmp.eq.s32.totalorder %s23, 0
      %p234 = por %p232, %p233
      %s235 = ssub.s32 %s24, %s36
      %p236 = scmp.eq.s32.totalorder %s235, 0
      %s238 = sadd.s32 %s237, 1
      %s239 = scalar_select %p236, %s237, %s238
      %p242 = pneg %p236
      %p243 = scmp.eq.s32.totalorder %s17, 3
      %p244 = por %p242, %p243
      %p245 = scmp.ne.s32.totalorder %s237, %s240
      %p246 = scmp.eq.s32.totalorder %s17, 0
      %p247 = por %p245, %p246
      %p248 = scmp.ne.s32.totalorder %s237, %s240
      %p249 = scmp.eq.s32.totalorder %s22, 3
      %p250 = por %p248, %p249
      %p251 = scmp.ne.s32.totalorder %s240, %s241
      %p252 = scmp.eq.s32.totalorder %s22, 0
      %p253 = por %p251, %p252
      %p254 = scmp.ne.s32.totalorder %s240, %s241
      %p255 = scmp.eq.s32.totalorder %s23, 3
      %p256 = por %p254, %p255
      %p258 = scmp.ne.s32.totalorder %s241, %s257
      %p259 = scmp.eq.s32.totalorder %s23, 0
      %p260 = por %p258, %p259
      %p261 = scmp.le.s32.totalorder 1, %s17
      %p262 = scmp.lt.s32.totalorder %s17, 5
      %p263 = pnand %p261, %p262
      %p264 = pneg %p263
      // Predicated region
      $region9: #{tpu_custom_call.1} parent=5 // pred_check
        _
      $region10: #{tpu_custom_call.1} parent=5 // pred_check_branch
        %266 = sbr.rel (%p263) target = $region12
      $region11: #{tpu_custom_call.1} parent=5 // pred_region
        %s267 = ssub.s32 %s17, 1
        // Predicated region
        $region13: #{tpu_custom_call.1} parent=11 // pred_check
          %p268 = pneg %p206
        $region14: #{tpu_custom_call.1} parent=11 // pred_check_branch
          %270 = sbr.rel (%p268) target = $region16
        $region15: #{tpu_custom_call.1} parent=11 // pred_region
          _
        $region16: #{tpu_custom_call.1} parent=11 // pred_fallthru
          _
        // Predicated region
        $region17: #{tpu_custom_call.1} parent=11 // pred_check
          %p271 = pneg %p227
        $region18: #{tpu_custom_call.1} parent=11 // pred_check_branch
          %273 = sbr.rel (%p271) target = $region20
        $region19: #{tpu_custom_call.1} parent=11 // pred_region
          _
        $region20: #{tpu_custom_call.1} parent=11 // pred_fallthru
          _
      $region12: #{tpu_custom_call.1} parent=5 // pred_fallthru
        _
      %p274 = scmp.lt.s32.totalorder %s17, 4
      // Predicated region
      $region21: #{tpu_custom_call.1} parent=5 // pred_check
        %p275 = pneg %p274
      $region22: #{tpu_custom_call.1} parent=5 // pred_check_branch
        %277 = sbr.rel (%p275) target = $region24
      $region23: #{tpu_custom_call.1} parent=5 // pred_region
        // Predicated region
        $region25: #{tpu_custom_call.1} parent=23 // pred_check
          %p278 = pneg %p49
        $region26: #{tpu_custom_call.1} parent=23 // pred_check_branch
          %280 = sbr.rel (%p278) target = $region28
        $region27: #{tpu_custom_call.1} parent=23 // pred_region
          %p281 = scmp.lt.s32.totalorder %s24, 1
          %s282 = scalar_select %p281, %s24, 1
          %s283 = smul.addr %s282, 4
          %s284 = scalar_lea.vmem %s0, %s283
        $region28: #{tpu_custom_call.1} parent=23 // pred_fallthru
          _
        // Predicated region
        $region29: #{tpu_custom_call.1} parent=23 // pred_check
          %p285 = pneg %p75
        $region30: #{tpu_custom_call.1} parent=23 // pred_check_branch
          %287 = sbr.rel (%p285) target = $region32
        $region31: #{tpu_custom_call.1} parent=23 // pred_region
          %p288 = scmp.lt.s32.totalorder %s25, 1
          %s289 = scalar_select %p288, %s25, 1
          %s290 = smul.addr %s289, 4
          %s291 = smul.addr %s290, 4
          %s292 = scalar_lea.vmem %s1, %s291
        $region32: #{tpu_custom_call.1} parent=23 // pred_fallthru
          _
        // Predicated region
        $region33: #{tpu_custom_call.1} parent=23 // pred_check
          %p293 = pneg %p101
        $region34: #{tpu_custom_call.1} parent=23 // pred_check_branch
          %295 = sbr.rel (%p293) target = $region36
        $region35: #{tpu_custom_call.1} parent=23 // pred_region
          %p296 = scmp.lt.s32.totalorder %s25, 1
          %s297 = scalar_select %p296, %s25, 1
          %s298 = smul.addr %s297, 4
          %s299 = smul.addr %s298, 4
          %s300 = scalar_lea.vmem %s2, %s299
        $region36: #{tpu_custom_call.1} parent=23 // pred_fallthru
          _
        // Predicated region
        $region37: #{tpu_custom_call.1} parent=23 // pred_check
          %p301 = pneg %p127
        $region38: #{tpu_custom_call.1} parent=23 // pred_check_branch
          %303 = sbr.rel (%p301) target = $region40
        $region39: #{tpu_custom_call.1} parent=23 // pred_region
          %p304 = scmp.lt.s32.totalorder %s25, 1
          %s305 = scalar_select %p304, %s25, 1
          %s306 = smul.addr %s305, 4
          %s307 = smul.addr %s306, 4
          %s308 = scalar_lea.vmem %s3, %s307
        $region40: #{tpu_custom_call.1} parent=23 // pred_fallthru
          _
        // Predicated region
        $region41: #{tpu_custom_call.1} parent=23 // pred_check
          %p309 = pneg %p153
        $region42: #{tpu_custom_call.1} parent=23 // pred_check_branch
          %311 = sbr.rel (%p309) target = $region44
        $region43: #{tpu_custom_call.1} parent=23 // pred_region
          %p312 = scmp.lt.s32.totalorder %s25, 1
          %s313 = scalar_select %p312, %s25, 1
          %s314 = smul.addr %s313, 2
          %s315 = smul.addr %s314, 4
          %s316 = scalar_lea.vmem %s4, %s315
        $region44: #{tpu_custom_call.1} parent=23 // pred_fallthru
          _
        // Predicated region
        $region45: #{tpu_custom_call.1} parent=23 // pred_check
          %p317 = pneg %p179
        $region46: #{tpu_custom_call.1} parent=23 // pred_check_branch
          %319 = sbr.rel (%p317) target = $region48
        $region47: #{tpu_custom_call.1} parent=23 // pred_region
          %p320 = scmp.lt.s32.totalorder %s25, 1
          %s321 = scalar_select %p320, %s25, 1
          %s322 = scalar_lea.vmem %s5, %s321
        $region48: #{tpu_custom_call.1} parent=23 // pred_fallthru
          _
      $region24: #{tpu_custom_call.1} parent=5 // pred_fallthru
        _
      %p323 = scmp.le.s32.totalorder 1, %s17
      %p324 = scmp.lt.s32.totalorder %s17, 5
      %p325 = pnand %p323, %p324
      %p326 = pneg %p325
      // Predicated region
      $region49: #{tpu_custom_call.1} parent=5 // pred_check
        _
      $region50: #{tpu_custom_call.1} parent=5 // pred_check_branch
        %328 = sbr.rel (%p325) target = $region52
      $region51: #{tpu_custom_call.1} parent=5 // pred_region
        %s329 = ssub.s32 %s17, 1
        %p330 = scmp.lt.s32.totalorder %s26, 1
        %s331 = scalar_select %p330, %s26, 1
        %s332 = smul.addr %s331, 4
        %s333 = scalar_lea.vmem %s0, %s332
        %p334 = pneg %p55
        %p335 = pneg %p52
        %p336 = scmp.lt.s32.totalorder %s27, 1
        %s337 = scalar_select %p336, %s27, 1
        %s338 = smul.addr %s337, 4
        %s339 = smul.addr %s338, 4
        %s340 = scalar_lea.vmem %s1, %s339
        %p341 = pneg %p81
        %p342 = pneg %p78
        %p343 = scmp.lt.s32.totalorder %s27, 1
        %s344 = scalar_select %p343, %s27, 1
        %s345 = smul.addr %s344, 4
        %s346 = smul.addr %s345, 4
        %s347 = scalar_lea.vmem %s2, %s346
        %p348 = pneg %p107
        %p349 = pneg %p104
        %p350 = scmp.lt.s32.totalorder %s27, 1
        %s351 = scalar_select %p350, %s27, 1
        %s352 = smul.addr %s351, 4
        %s353 = smul.addr %s352, 4
        %s354 = scalar_lea.vmem %s3, %s353
        %p355 = pneg %p133
        %p356 = pneg %p130
        %p357 = scmp.lt.s32.totalorder %s27, 1
        %s358 = scalar_select %p357, %s27, 1
        %s359 = smul.addr %s358, 2
        %s360 = smul.addr %s359, 4
        %s361 = scalar_lea.vmem %s4, %s360
        %p362 = pneg %p159
        %p363 = pneg %p156
        %p364 = scmp.lt.s32.totalorder %s27, 1
        %s365 = scalar_select %p364, %s27, 1
        %s366 = scalar_lea.vmem %s5, %s365
        %p367 = pneg %p185
        %p368 = pneg %p182
        %p369 = pneg %p206
        %p370 = pneg %p203
        %p371 = pneg %p227
        %p372 = pneg %p224
        %p373 = pneg %p253
        %p374 = pneg %p250
        %s375 = sand.u32 %s240, 1
        %s376 = scalar_lea.sflag [#allocation4], %s375
        %s377 = sand.u32 %s240, 1
        %s378 = smul.addr %s377, 8
        %s379 = scalar_lea.vmem [#allocation3], %s378
        %p380 = scmp.lt.s32.totalorder %s26, 1
        %s381 = scalar_select %p380, %s26, 1
        %s382 = smul.addr %s381, 4
        %s383 = scalar_lea.vmem %s0, %s382
        %p384 = scmp.lt.s32.totalorder %s27, 1
        %s385 = scalar_select %p384, %s27, 1
        %s386 = smul.addr %s385, 4
        %s387 = smul.addr %s386, 4
        %s388 = scalar_lea.vmem %s1, %s387
        %p389 = scmp.lt.s32.totalorder %s27, 1
        %s390 = scalar_select %p389, %s27, 1
        %s391 = smul.addr %s390, 4
        %s392 = smul.addr %s391, 4
        %s393 = scalar_lea.vmem %s2, %s392
        %p394 = scmp.lt.s32.totalorder %s27, 1
        %s395 = scalar_select %p394, %s27, 1
        %s396 = smul.addr %s395, 4
        %s397 = smul.addr %s396, 4
        %s398 = scalar_lea.vmem %s3, %s397
        %p399 = scmp.lt.s32.totalorder %s27, 1
        %s400 = scalar_select %p399, %s27, 1
        %s401 = smul.addr %s400, 2
        %s402 = smul.addr %s401, 4
        %s403 = scalar_lea.vmem %s4, %s402
        %p404 = scmp.lt.s32.totalorder %s27, 1
        %s405 = scalar_select %p404, %s27, 1
        %s406 = scalar_lea.vmem %s5, %s405
        %v408 = vld [vmem:[%s383] sm:$0xf]
        %v409 = vld [vmem:[%s406] sm:$0x1]
        %v410 = vld [vmem:[%s388] sm:$0xf]
        %v411 = vld [vmem:[%s388 + $0x4] sm:$0xf]
        %v412 = vld [vmem:[%s388 + $0x8] sm:$0xf]
        %v413 = vld [vmem:[%s388 + $0xc] sm:$0xf]
        %v415 = vlaneseq
        %v416 = vshrl.u32 %v415, 7
        %v417 = vsub.s32 0, %v416
        %v418 = vrot.slane %v409, %v417
        %v424 = vunpack.c.l.b16 %v410
        %v425 = vunpack.c.l.b16 %v411
        %v426 = vunpack.c.l.b16 %v412
        %v427 = vunpack.c.l.b16 %v413
        %v428 = vpack.c.b16 %v425, %v424
        %v429 = vpack.c.b16 %v427, %v426
        %vm432 = vcmask 261120
        %v434 = vsel %vm432, %v408, 0
        %436 = vmatprep.subr.bf16.mxu0 0
        %437 = vmatpush1.bf16.msra.mxu0 %v428
        %438 = vmatprep.subr.bf16.mxu0 0
        %439 = vmatpush1.bf16.msra.mxu0 %v429
        %440 = vmatprep.subr.bf16.mxu0 0
        %441 = vmatpush1.bf16.msra.mxu0 0
        %442 = vmatprep.subr.bf16.mxu0 0
        %443 = vmatpush1.bf16.msra.mxu0 0
        %444 = vmatprep.subr.bf16.mxu0 0
        %445 = vmatpush1.bf16.msra.mxu0 0
        %446 = vmatprep.subr.bf16.mxu0 0
        %447 = vmatpush1.bf16.msra.mxu0 0
        %448 = vmatprep.subr.bf16.mxu0 0
        %449 = vmatpush1.bf16.msra.mxu0 0
        %450 = vmatprep.subr.bf16.mxu0 0
        %451 = vmatpush1.bf16.msra.mxu0 0
        %452 = vmatprep.subr.bf16.mxu0 0
        %453 = vmatpush1.bf16.msra.mxu0 0
        %454 = vmatprep.subr.bf16.mxu0 0
        %455 = vmatpush1.bf16.msra.mxu0 0
        %456 = vmatprep.subr.bf16.mxu0 0
        %457 = vmatpush1.bf16.msra.mxu0 0
        %458 = vmatprep.subr.bf16.mxu0 0
        %459 = vmatpush1.bf16.msra.mxu0 0
        %460 = vmatprep.subr.bf16.mxu0 0
        %461 = vmatpush1.bf16.msra.mxu0 0
        %462 = vmatprep.subr.bf16.mxu0 0
        %463 = vmatpush1.bf16.msra.mxu0 0
        %464 = vmatprep.subr.bf16.mxu0 0
        %465 = vmatpush1.bf16.msra.mxu0 0
        %466 = vmatprep.subr.bf16.mxu0 0
        %467 = vmatpush1.bf16.msra.mxu0 0
        %468 = vmatprep.mubr.bf16.mxu0 0
        %469 = vmatmul.mubr.bf16.gmra.mrb[0].mxu0 %v434
        %v470 = vpop.f32.mrb[0].mxu0
        %v471 = vadd.f32 %v418, %v470
        %v472 = vpop.f32.mrb[0].mxu0
        %v473 = vpop.f32.mrb[0].mxu0
        %v474 = vpop.f32.mrb[0].mxu0
        %475 = vdwg.mxu0
        %v476 = vld [vmem:[%s393] sm:$0xf]
        %v477 = vld [vmem:[%s393 + $0x4] sm:$0xf]
        %v478 = vld [vmem:[%s393 + $0x8] sm:$0xf]
        %v479 = vld [vmem:[%s393 + $0xc] sm:$0xf]
        %v484 = vunpack.c.l.b16 %v476
        %v485 = vunpack.c.l.b16 %v477
        %v486 = vunpack.c.l.b16 %v478
        %v487 = vunpack.c.l.b16 %v479
        %v488 = vpack.c.b16 %v485, %v484
        %v489 = vpack.c.b16 %v487, %v486
        %492 = vrot.lane.b32.xlu0 %v418, 112
        %v493 = vpop.permute.xlu0 %492
        %495 = vmatprep.subr.bf16.mxu0 0
        %496 = vmatpush1.bf16.msra.mxu0 %v488
        %497 = vmatprep.subr.bf16.mxu0 0
        %498 = vmatpush1.bf16.msra.mxu0 %v489
        %499 = vmatprep.subr.bf16.mxu0 0
        %500 = vmatpush1.bf16.msra.mxu0 0
        %501 = vmatprep.subr.bf16.mxu0 0
        %502 = vmatpush1.bf16.msra.mxu0 0
        %503 = vmatprep.subr.bf16.mxu0 0
        %504 = vmatpush1.bf16.msra.mxu0 0
        %505 = vmatprep.subr.bf16.mxu0 0
        %506 = vmatpush1.bf16.msra.mxu0 0
        %507 = vmatprep.subr.bf16.mxu0 0
        %508 = vmatpush1.bf16.msra.mxu0 0
        %509 = vmatprep.subr.bf16.mxu0 0
        %510 = vmatpush1.bf16.msra.mxu0 0
        %511 = vmatprep.subr.bf16.mxu0 0
        %512 = vmatpush1.bf16.msra.mxu0 0
        %513 = vmatprep.subr.bf16.mxu0 0
        %514 = vmatpush1.bf16.msra.mxu0 0
        %515 = vmatprep.subr.bf16.mxu0 0
        %516 = vmatpush1.bf16.msra.mxu0 0
        %517 = vmatprep.subr.bf16.mxu0 0
        %518 = vmatpush1.bf16.msra.mxu0 0
        %519 = vmatprep.subr.bf16.mxu0 0
        %520 = vmatpush1.bf16.msra.mxu0 0
        %521 = vmatprep.subr.bf16.mxu0 0
        %522 = vmatpush1.bf16.msra.mxu0 0
        %523 = vmatprep.subr.bf16.mxu0 0
        %524 = vmatpush1.bf16.msra.mxu0 0
        %525 = vmatprep.subr.bf16.mxu0 0
        %526 = vmatpush1.bf16.msra.mxu0 0
        %527 = vmatprep.mubr.bf16.mxu0 0
        %528 = vmatmul.mubr.bf16.gmra.mrb[0].mxu0 %v434
        %v529 = vpop.f32.mrb[0].mxu0
        %v530 = vadd.f32 %v493, %v529
        %v531 = vpop.f32.mrb[0].mxu0
        %v532 = vpop.f32.mrb[0].mxu0
        %v533 = vpop.f32.mrb[0].mxu0
        %534 = vdwg.mxu0
        %v535 = vld [vmem:[%s398] sm:$0xf]
        %v536 = vld [vmem:[%s398 + $0x4] sm:$0xf]
        %v537 = vld [vmem:[%s398 + $0x8] sm:$0xf]
        %v538 = vld [vmem:[%s398 + $0xc] sm:$0xf]
        %v543 = vunpack.c.l.b16 %v535
        %v544 = vunpack.c.l.b16 %v536
        %v545 = vunpack.c.l.b16 %v537
        %v546 = vunpack.c.l.b16 %v538
        %v547 = vpack.c.b16 %v544, %v543
        %v548 = vpack.c.b16 %v546, %v545
        %551 = vrot.lane.b32.xlu0 %v418, 104
        %v552 = vpop.permute.xlu0 %551
        %554 = vmatprep.subr.bf16.mxu0 0
        %555 = vmatpush1.bf16.msra.mxu0 %v547
        %556 = vmatprep.subr.bf16.mxu0 0
        %557 = vmatpush1.bf16.msra.mxu0 %v548
        %558 = vmatprep.subr.bf16.mxu0 0
        %559 = vmatpush1.bf16.msra.mxu0 0
        %560 = vmatprep.subr.bf16.mxu0 0
        %561 = vmatpush1.bf16.msra.mxu0 0
        %562 = vmatprep.subr.bf16.mxu0 0
        %563 = vmatpush1.bf16.msra.mxu0 0
        %564 = vmatprep.subr.bf16.mxu0 0
        %565 = vmatpush1.bf16.msra.mxu0 0
        %566 = vmatprep.subr.bf16.mxu0 0
        %567 = vmatpush1.bf16.msra.mxu0 0
        %568 = vmatprep.subr.bf16.mxu0 0
        %569 = vmatpush1.bf16.msra.mxu0 0
        %570 = vmatprep.subr.bf16.mxu0 0
        %571 = vmatpush1.bf16.msra.mxu0 0
        %572 = vmatprep.subr.bf16.mxu0 0
        %573 = vmatpush1.bf16.msra.mxu0 0
        %574 = vmatprep.subr.bf16.mxu0 0
        %575 = vmatpush1.bf16.msra.mxu0 0
        %576 = vmatprep.subr.bf16.mxu0 0
        %577 = vmatpush1.bf16.msra.mxu0 0
        %578 = vmatprep.subr.bf16.mxu0 0
        %579 = vmatpush1.bf16.msra.mxu0 0
        %580 = vmatprep.subr.bf16.mxu0 0
        %581 = vmatpush1.bf16.msra.mxu0 0
        %582 = vmatprep.subr.bf16.mxu0 0
        %583 = vmatpush1.bf16.msra.mxu0 0
        %584 = vmatprep.subr.bf16.mxu0 0
        %585 = vmatpush1.bf16.msra.mxu0 0
        %586 = vmatprep.mubr.bf16.mxu0 0
        %587 = vmatmul.mubr.bf16.gmra.mrb[0].mxu0 %v434
        %v588 = vpop.f32.mrb[0].mxu0
        %v589 = vadd.f32 %v552, %v588
        %v590 = vpop.f32.mrb[0].mxu0
        %v591 = vpop.f32.mrb[0].mxu0
        %v592 = vpop.f32.mrb[0].mxu0
        %593 = vdwg.mxu0
        %595 = vrot.lane.b32.xlu0 %v471, 120
        %v596 = vpop.permute.xlu0 %595
        %v598 = vld [vmem:[%s7] sm:$0xff]
        %v599 = vld [vmem:[%s7 + $0x8] sm:$0xff]
        %s600 = scalar_lea.vmem %s7, 16
        %v601 = vld [vmem:[%s600] sm:$0xff]
        %v602 = vld [vmem:[%s600 + $0x8] sm:$0xff]
        %v603 = vmul.f32 %v471, %v598
        %v604 = vmul.f32 %v596, %v599
        %605 = vrot.lane.b32.xlu0 %v471, 124
        %v606 = vpop.permute.xlu0 %605
        %607 = vrot.lane.b32.xlu0 %v596, 124
        %v608 = vpop.permute.xlu0 %607
        %611 = vrot.lane.b32.xlu0 %v471, 4
        %v612 = vpop.permute.xlu0 %611
        %613 = vrot.lane.b32.xlu0 %v596, 4
        %v614 = vpop.permute.xlu0 %613
        %vm617 = vcmask 31744
        %v618 = vsel %vm617, %v606, %v612
        %v619 = vsel %vm617, %v608, %v614
        %v620 = vmul.f32 %v618, %v601
        %v621 = vmul.f32 %v619, %v602
        %v622 = vadd.f32 %v603, %v620
        %v623 = vadd.f32 %v604, %v621
        %v624 = vmul.f32 %v530, %v598
        %626 = vrot.lane.b32.xlu0 %v530, 124
        %v627 = vpop.permute.xlu0 %626
        %629 = vrot.lane.b32.xlu0 %v530, 4
        %v630 = vpop.permute.xlu0 %629
        %v632 = vsel %vm617, %v627, %v630
        %v633 = vmul.f32 %v632, %v601
        %v634 = vadd.f32 %v624, %v633
        %v635 = vpack.c.bf16 %v623, %v622
        %v636 = vpack.c.bf16 %v634, %v634
        %vm637 = vcmask 64512
        %v639 = vsel %vm637, %v635, 0
        %v642 = vsel %vm637, %v636, 0
        %644 = vmatprep.subr.bf16.mxu0 0
        %645 = vmatpush1.bf16.xpose.msra.mxu0 %v642
        %646 = vmatprep.subr.bf16.mxu0 0
        %647 = vmatpush1.bf16.xpose.msra.mxu0 0
        %648 = vmatprep.subr.bf16.mxu0 0
        %649 = vmatpush1.bf16.xpose.msra.mxu0 0
        %650 = vmatprep.subr.bf16.mxu0 0
        %651 = vmatpush1.bf16.xpose.msra.mxu0 0
        %652 = vmatprep.subr.bf16.mxu0 0
        %653 = vmatpush1.bf16.xpose.msra.mxu0 0
        %654 = vmatprep.subr.bf16.mxu0 0
        %655 = vmatpush1.bf16.xpose.msra.mxu0 0
        %656 = vmatprep.subr.bf16.mxu0 0
        %657 = vmatpush1.bf16.xpose.msra.mxu0 0
        %658 = vmatprep.subr.bf16.mxu0 0
        %659 = vmatpush1.bf16.xpose.msra.mxu0 0
        %660 = vmatprep.subr.bf16.mxu0 0
        %661 = vmatpush1.bf16.xpose.msra.mxu0 0
        %662 = vmatprep.subr.bf16.mxu0 0
        %663 = vmatpush1.bf16.xpose.msra.mxu0 0
        %664 = vmatprep.subr.bf16.mxu0 0
        %665 = vmatpush1.bf16.xpose.msra.mxu0 0
        %666 = vmatprep.subr.bf16.mxu0 0
        %667 = vmatpush1.bf16.xpose.msra.mxu0 0
        %668 = vmatprep.subr.bf16.mxu0 0
        %669 = vmatpush1.bf16.xpose.msra.mxu0 0
        %670 = vmatprep.subr.bf16.mxu0 0
        %671 = vmatpush1.bf16.xpose.msra.mxu0 0
        %672 = vmatprep.subr.bf16.mxu0 0
        %673 = vmatpush1.bf16.xpose.msra.mxu0 0
        %674 = vmatprep.subr.bf16.mxu0 0
        %675 = vmatpush1.bf16.xpose.msra.mxu0 0
        %676 = vmatprep.mubr.bf16.mxu0 0
        %677 = vmatmul.mubr.bf16.gmra.mrb[0].mxu0 %v639
        %v678 = vpop.f32.mrb[0].mxu0
        %v679 = vadd.f32 0.0, %v678
        %v680 = vpop.f32.mrb[0].mxu0
        %v681 = vpop.f32.mrb[0].mxu0
        %v682 = vadd.f32 0.0, %v681
        %v683 = vpop.f32.mrb[0].mxu0
        %684 = vdwg.mxu0
        %v685 = vlaneseq
        %v686 = vshrl.u32 %v685, 7
        %v687 = vlaneseq
        %v688 = vand.u32 %v687, 127
        %vm689 = vcmp.ge.s32.totalorder %v686, %v688
        %v690 = vsel %vm689, %v679, -1e+30
        %v691 = vsel %vm689, %v682, -1e+30
        %v692 = vsel %vm637, %v690, -inf
        %693 = vmax.xlane.f32.xlu0 %v692
        %v694 = vpop.xlane.xlu0 %693
        %v695 = vsel %vm637, %v691, -inf
        %696 = vmax.xlane.f32.xlu0 %v695
        %v697 = vpop.xlane.xlu0 %696
        %v698 = vsub.f32 %v690, %v694
        %v699 = vsub.f32 %v691, %v697
        %v700 = vmul.f32 %v698, 1.442695
        %v701 = vpow.pop %v700
        %v702 = vmul.f32 %v699, 1.442695
        %v703 = vpow.pop %v702
        %v704 = vsel %vm637, %v701, 0.0
        %705 = vadd.xlane.f32.xlu0 %v704
        %v706 = vpop.xlane.xlu0 %705
        %v707 = vsel %vm637, %v703, 0.0
        %708 = vadd.xlane.f32.xlu0 %v707
        %v709 = vpop.xlane.xlu0 %708
        %v710 = vpack.c.bf16 %v703, %v701
        %v711 = vpack.c.bf16 %v589, %v589
        %v713 = vsel %vm637, %v710, 0
        %vm715 = vcmask 1043456
        %v717 = vsel %vm715, %v711, 0
        %719 = vmatprep.subr.bf16.mxu0 0
        %720 = vmatpush1.bf16.msra.mxu0 %v717
        %721 = vmatprep.subr.bf16.mxu0 0
        %722 = vmatpush1.bf16.msra.mxu0 0
        %723 = vmatprep.subr.bf16.mxu0 0
        %724 = vmatpush1.bf16.msra.mxu0 0
        %725 = vmatprep.subr.bf16.mxu0 0
        %726 = vmatpush1.bf16.msra.mxu0 0
        %727 = vmatprep.subr.bf16.mxu0 0
        %728 = vmatpush1.bf16.msra.mxu0 0
        %729 = vmatprep.subr.bf16.mxu0 0
        %730 = vmatpush1.bf16.msra.mxu0 0
        %731 = vmatprep.subr.bf16.mxu0 0
        %732 = vmatpush1.bf16.msra.mxu0 0
        %733 = vmatprep.subr.bf16.mxu0 0
        %734 = vmatpush1.bf16.msra.mxu0 0
        %735 = vmatprep.subr.bf16.mxu0 0
        %736 = vmatpush1.bf16.msra.mxu0 0
        %737 = vmatprep.subr.bf16.mxu0 0
        %738 = vmatpush1.bf16.msra.mxu0 0
        %739 = vmatprep.subr.bf16.mxu0 0
        %740 = vmatpush1.bf16.msra.mxu0 0
        %741 = vmatprep.subr.bf16.mxu0 0
        %742 = vmatpush1.bf16.msra.mxu0 0
        %743 = vmatprep.subr.bf16.mxu0 0
        %744 = vmatpush1.bf16.msra.mxu0 0
        %745 = vmatprep.subr.bf16.mxu0 0
        %746 = vmatpush1.bf16.msra.mxu0 0
        %747 = vmatprep.subr.bf16.mxu0 0
        %748 = vmatpush1.bf16.msra.mxu0 0
        %749 = vmatprep.subr.bf16.mxu0 0
        %750 = vmatpush1.bf16.msra.mxu0 0
        %751 = vmatprep.mubr.bf16.mxu0 0
        %752 = vmatmul.mubr.bf16.gmra.mrb[0].mxu0 %v713
        %v753 = vpop.f32.mrb[0].mxu0
        %v754 = vadd.f32 0.0, %v753
        %v755 = vpop.f32.mrb[0].mxu0
        %v756 = vpop.f32.mrb[0].mxu0
        %v757 = vadd.f32 0.0, %v756
        %v758 = vpop.f32.mrb[0].mxu0
        %759 = vdwg.mxu0
        %v760 = vrcp.pop %v706
        %v761 = vrcp.pop %v709
        %v762 = vmul.f32 %v754, %v760
        %v763 = vmul.f32 %v757, %v761
        %765 = vrot.lane.b32.xlu0 %v763, 8
        %v766 = vpop.permute.xlu0 %765
        %v768 = vsel %vm637, %v762, %v766
        %v769 = vpack.c.bf16 %v768, %v768
        %v770 = vld [vmem:[%s403] sm:$0xf]
        %v771 = vld [vmem:[%s403 + $0x4] sm:$0xf]
        %v774 = vunpack.c.l.b16 %v770
        %v775 = vunpack.c.l.b16 %v771
        %v776 = vpack.c.b16 %v775, %v774
        %vm778 = vcmask 130048
        %v780 = vsel %vm778, %v769, 0
        %782 = vmatprep.subr.bf16.mxu0 0
        %783 = vmatpush1.bf16.msra.mxu0 %v776
        %784 = vmatprep.subr.bf16.mxu0 0
        %785 = vmatpush1.bf16.msra.mxu0 0
        %786 = vmatprep.subr.bf16.mxu0 0
        %787 = vmatpush1.bf16.msra.mxu0 0
        %788 = vmatprep.subr.bf16.mxu0 0
        %789 = vmatpush1.bf16.msra.mxu0 0
        %790 = vmatprep.subr.bf16.mxu0 0
        %791 = vmatpush1.bf16.msra.mxu0 0
        %792 = vmatprep.subr.bf16.mxu0 0
        %793 = vmatpush1.bf16.msra.mxu0 0
        %794 = vmatprep.subr.bf16.mxu0 0
        %795 = vmatpush1.bf16.msra.mxu0 0
        %796 = vmatprep.subr.bf16.mxu0 0
        %797 = vmatpush1.bf16.msra.mxu0 0
        %798 = vmatprep.subr.bf16.mxu0 0
        %799 = vmatpush1.bf16.msra.mxu0 0
        %800 = vmatprep.subr.bf16.mxu0 0
        %801 = vmatpush1.bf16.msra.mxu0 0
        %802 = vmatprep.subr.bf16.mxu0 0
        %803 = vmatpush1.bf16.msra.mxu0 0
        %804 = vmatprep.subr.bf16.mxu0 0
        %805 = vmatpush1.bf16.msra.mxu0 0
        %806 = vmatprep.subr.bf16.mxu0 0
        %807 = vmatpush1.bf16.msra.mxu0 0
        %808 = vmatprep.subr.bf16.mxu0 0
        %809 = vmatpush1.bf16.msra.mxu0 0
        %810 = vmatprep.subr.bf16.mxu0 0
        %811 = vmatpush1.bf16.msra.mxu0 0
        %812 = vmatprep.subr.bf16.mxu0 0
        %813 = vmatpush1.bf16.msra.mxu0 0
        %814 = vmatprep.mubr.bf16.mxu0 0
        %815 = vmatmul.mubr.bf16.gmra.mrb[0].mxu0 %v780
        %v816 = vpop.f32.mrb[0].mxu0
        %v817 = vadd.f32 0.0, %v816
        %v818 = vpop.f32.mrb[0].mxu0
        %v819 = vpop.f32.mrb[0].mxu0
        %v820 = vpop.f32.mrb[0].mxu0
        %821 = vdwg.mxu0
        %p822 = scmp.eq.s32.totalorder %s27, 0
        // Predicated region
        $region53: #{tpu_custom_call.1} parent=51 // pred_check
          %p823 = pneg %p822
        $region54: #{tpu_custom_call.1} parent=51 // pred_check_branch
          %825 = sbr.rel (%p823) target = $region56
        $region55: #{tpu_custom_call.1} parent=51 // pred_region
          %826 = vst.msk [vmem:[#allocation2] sm:$0xff] %vm432, %v817
        $region56: #{tpu_custom_call.1} parent=51 // pred_fallthru
          _
        %p827 = scmp.ne.s32.totalorder %s27, 0
        // Predicated region
        $region57: #{tpu_custom_call.1} parent=51 // pred_check
          %p828 = pneg %p827
        $region58: #{tpu_custom_call.1} parent=51 // pred_check_branch
          %830 = sbr.rel (%p828) target = $region60
        $region59: #{tpu_custom_call.1} parent=51 // pred_region
          %v831 = vld [vmem:[#allocation2] sm:$0xff]
          %v832 = vadd.f32 %v831, %v817
          %833 = vst.msk [vmem:[#allocation2] sm:$0xff] %vm432, %v832
        $region60: #{tpu_custom_call.1} parent=51 // pred_fallthru
          _
        %p834 = scmp.eq.s32.totalorder %s27, 1
        // Predicated region
        $region61: #{tpu_custom_call.1} parent=51 // pred_check
          %p835 = pneg %p834
        $region62: #{tpu_custom_call.1} parent=51 // pred_check_branch
          %837 = sbr.rel (%p835) target = $region64
        $region63: #{tpu_custom_call.1} parent=51 // pred_region
          %v838 = vld [vmem:[#allocation2] sm:$0xff]
          %v839 = vld [vmem:[%s6] sm:$0x1]
          %v841 = vlaneseq
          %v842 = vshrl.u32 %v841, 7
          %v843 = vsub.s32 0, %v842
          %v844 = vrot.slane %v839, %v843
          %v846 = vadd.f32 %v838, %v844
          %847 = vst.msk [vmem:[%s379] sm:$0xff] %vm432, %v846
        $region64: #{tpu_custom_call.1} parent=51 // pred_fallthru
          _
        %s848 = sand.u32 %s240, 1
        %s849 = scalar_lea.sflag [#allocation4], %s848
        %s850 = sand.u32 %s240, 1
        %s851 = smul.addr %s850, 8
        %s852 = scalar_lea.vmem [#allocation3], %s851
        // Predicated region
        $region65: #{tpu_custom_call.1} parent=51 // pred_check
          %p853 = pneg %p250
        $region66: #{tpu_custom_call.1} parent=51 // pred_check_branch
          %855 = sbr.rel (%p853) target = $region68
        $region67: #{tpu_custom_call.1} parent=51 // pred_region
          %s857 = ssub.s32 128, 128
          %858 = vsyncadd %s849, %s857
          %s859 = smul.addr %s26, 128
          %s860 = scalar_lea.hbm %s8, %s859
          %s862 = sshll.u32 %s852, 4
          %s863 = int_to_ptr.vmem [resolvable:$true] %s862
          %865 = dma.vmem_to_hbm [thread:$0]  %s863, 128, %s860, %s849
        $region68: #{tpu_custom_call.1} parent=51 // pred_fallthru
          _
      $region52: #{tpu_custom_call.1} parent=5 // pred_fallthru
        _
      %p866 = scmp.le.s32.totalorder 2, %s17
      // Predicated region
      $region69: #{tpu_custom_call.1} parent=5 // pred_check
        %p867 = pneg %p866
      $region70: #{tpu_custom_call.1} parent=5 // pred_check_branch
        %869 = sbr.rel (%p867) target = $region72
      $region71: #{tpu_custom_call.1} parent=5 // pred_region
        %s870 = ssub.s32 %s17, 2
        // Predicated region
        $region73: #{tpu_custom_call.1} parent=71 // pred_check
          %p871 = pneg %p256
        $region74: #{tpu_custom_call.1} parent=71 // pred_check_branch
          %873 = sbr.rel (%p871) target = $region76
        $region75: #{tpu_custom_call.1} parent=71 // pred_region
          %s874 = sand.u32 %s241, 1
          %s875 = scalar_lea.sflag [#allocation4], %s874
          %s876 = sand.u32 %s241, 1
          %s877 = smul.addr %s876, 8
          %s878 = scalar_lea.vmem [#allocation3], %s877
          %879 = dma.done %s875, 128
        $region76: #{tpu_custom_call.1} parent=71 // pred_fallthru
          _
      $region72: #{tpu_custom_call.1} parent=5 // pred_fallthru
        _
    $region6: #{tpu_custom_call.1} parent=1 // loop_footer
      %s21 = sadd.s32 1, %s17
    $region7: #{tpu_custom_call.1} parent=1 // loop_footer_branch
      %16 = sbr.rel target = $region3
    $region8: #{tpu_custom_call.1} parent=1 // loop_exit
      _
    %880 = vsyncpa [#allocation4], 1
    %s881 = scalar_lea.sflag [#allocation4], 1
    %882 = vsyncpa %s881, 1

</llo_original>
